<compile_context>
chip_gen: v5e
topology: v5e:2x2
jax: 0.10.0
libtpu: 0.0.40
codegen_flags: <defaults>
</compile_context>

<pallas_src>
import jax
import jax.numpy as jnp
from jax.experimental import pallas as pl
from jax.experimental.pallas import tpu as pltpu


def _binary_classifier_kernel(xt_ref, w_ref, b_ref, o_ref):
    # xt_ref: (8, TB) VMEM   -- features on sublanes, batch on lanes (lane-dense)
    # w_ref : (8, 1)  VMEM   -- weight column (broadcast across lanes)
    # b_ref : (1,)    SMEM   -- bias scalar
    # o_ref : (1, TB) VMEM   -- lane-dense output slab
    x = xt_ref[...]
    w = w_ref[...]
    # VPU multiply + sublane (XLU) reduce; no MXU for this 8->1 dot.
    z = jnp.sum(x * w, axis=0, keepdims=True) + b_ref[0]
    o_ref[...] = 1.0 / (1.0 + jnp.exp(-z))  # sigmoid; exp on EUP


def _round_up(n, m):
    return ((n + m - 1) // m) * m


def _pick_tile(batch, tb_max):
    """Lane-tile size: multiple of 128, <= tb_max, and >= 2 grid steps when
    the batch is large enough (so the parallel axis shards across both v7x TCs)."""
    if batch <= 128:
        return max(batch, 1)          # full-extent block (allowed by Pallas)
    return min(tb_max, _round_up(pl.cdiv(batch, 2), 128))


def binary_classifier_forward_features_major(xt, weight, bias, *, tb_max=65536,
                                             return_lane_dense=False):
    """Forward pass, features-major input (preferred: no transpose needed).

    xt:     (8, B) float32 -- features on the leading axis, batch on the trailing axis
    weight: (1, 8), (8,), or (8, 1) float32 (nn.Linear weight or its transpose)
    bias:   (1,) float32
    returns (B, 1) float32 = sigmoid(x @ W^T + b), or the lane-dense (1, B)
            slab if return_lane_dense=True.
    """
    F, B = xt.shape
    assert F == 8, "BinaryClassifier expects 8 input features"

    xt = xt.astype(jnp.float32)
    w_col = jnp.asarray(weight, jnp.float32).reshape(8, 1)
    b_vec = jnp.asarray(bias, jnp.float32).reshape(1)

    tb = _pick_tile(B, tb_max)
    grid = (pl.cdiv(B, tb),)

    out = pl.pallas_call(
        _binary_classifier_kernel,
        grid=grid,
        out_shape=jax.ShapeDtypeStruct((1, B), jnp.float32),
        in_specs=[
            pl.BlockSpec((8, tb), lambda i: (0, i)),            # x tile (lane-dense)
            pl.BlockSpec((8, 1), lambda i: (0, 0)),             # weight column (revisited)
            pl.BlockSpec(memory_space=pltpu.MemorySpace.SMEM),  # bias scalar
        ],
        out_specs=pl.BlockSpec((1, tb), lambda i: (0, i)),
        compiler_params=pltpu.CompilerParams(
            dimension_semantics=("parallel",),
        ),
        cost_estimate=pl.CostEstimate(
            flops=16 * B,
            transcendentals=B,
            bytes_accessed=36 * B + 36,
        ),
    )(xt, w_col, b_vec)

    if return_lane_dense:
        return out                      # (1, B) lane-dense slab, no epilogue copy
    return out[0].reshape(B, 1)         # module-parity (B, 1) output


def binary_classifier_forward(x, weight, bias, *, tb_max=65536):
    """Forward pass with nn.Linear-style (B, 8) input.

    Note: this transposes to the features-major (8, B) layout; for large B the
    producer should ideally emit (8, B) directly and call
    binary_classifier_forward_features_major to avoid the extra HBM round trip.
    """
    B, F = x.shape
    assert F == 8, "BinaryClassifier expects 8 input features"
    xt = x.astype(jnp.float32).T
    return binary_classifier_forward_features_major(xt, weight, bias, tb_max=tb_max)


def init_params(key):
    """nn.Linear(8, 1) default init: U(-1/sqrt(8), 1/sqrt(8)) for weight and bias."""
    k_w, k_b = jax.random.split(key)
    bound = 1.0 / jnp.sqrt(8.0)
    weight = jax.random.uniform(k_w, (1, 8), jnp.float32, -bound, bound)  # (out, in)
    bias = jax.random.uniform(k_b, (1,), jnp.float32, -bound, bound)
    return weight, bias


if __name__ == "__main__":
    key = jax.random.PRNGKey(0)
    k_x, k_p, k_x2 = jax.random.split(key, 3)

    weight, bias = init_params(k_p)

    def reference(xx):
        return jax.nn.sigmoid(xx @ weight.T + bias)

    # Small case matching the module spec (batch=2, features=8).
    batch = 2
    x = jax.random.normal(k_x, (batch, 8), jnp.float32)
    y = binary_classifier_forward(x, weight, bias)
    jax.block_until_ready(y)
    assert y.shape == (batch, 1)
    assert jnp.allclose(y, reference(x), atol=1e-5), "mismatch vs reference (batch=2)"

    # Multi-step grid + partial trailing block (no host padding), (B, 8) wrapper.
    batch2 = 300
    x2 = jax.random.normal(k_x2, (batch2, 8), jnp.float32)
    y2 = binary_classifier_forward(x2, weight, bias, tb_max=256)
    jax.block_until_ready(y2)
    assert y2.shape == (batch2, 1)
    assert jnp.allclose(y2, reference(x2), atol=1e-5), "mismatch vs reference (batch=300)"

    # Features-major entry point + lane-dense output (no epilogue copy).
    y3 = binary_classifier_forward_features_major(
        x2.T, weight, bias, tb_max=256, return_lane_dense=True)
    jax.block_until_ready(y3)
    assert y3.shape == (1, batch2)
    assert jnp.allclose(y3[0], reference(x2)[:, 0], atol=1e-5), \
        "mismatch vs reference (features-major, batch=300)"

    print("KERNEL_OK")
</pallas_src>

<mosaic_0001>
module attributes {stable_mosaic.version = 11 : i64} {
  func.func @_binary_classifier_kernel(%arg0: i32, %arg1: memref<8x2xf32, #tpu.memory_space<vmem>>, %arg2: memref<8x1xf32, #tpu.memory_space<vmem>>, %arg3: memref<1xf32, #tpu.memory_space<smem>>, %arg4: memref<1x2xf32, #tpu.memory_space<vmem>>) attributes {dimension_semantics = [#tpu.dimension_semantics<parallel>], iteration_bounds = array<i64: 1>, scalar_prefetch = 0 : i64, scratch_operands = 0 : i64, tpu.core_type = #tpu.core_type<tc>, window_params = [{transform_indices = @transform_0, window_bounds = array<i64: 8, 2>}, {pipeline_mode = #tpu.pipeline_mode<synchronous>, transform_indices = @transform_1, window_bounds = array<i64: 8, 1>}, {transform_indices = @transform_2, window_bounds = array<i64: 1>}, {transform_indices = @transform_3, window_bounds = array<i64: 1, 2>}]} {
    %c0 = arith.constant 0 : index
    %c0_0 = arith.constant 0 : index
    %0 = vector.load %arg1[%c0, %c0_0] : memref<8x2xf32, #tpu.memory_space<vmem>>, vector<8x2xf32>
    %c0_1 = arith.constant 0 : index
    %c0_2 = arith.constant 0 : index
    %1 = vector.load %arg2[%c0_1, %c0_2] : memref<8x1xf32, #tpu.memory_space<vmem>>, vector<8x1xf32>
    %2 = vector.broadcast %1 : vector<8x1xf32> to vector<8x2xf32>
    %3 = arith.mulf %0, %2 : vector<8x2xf32>
    %cst = arith.constant dense<0.000000e+00> : vector<2xf32>
    %4 = vector.multi_reduction <add>, %3, %cst [0] : vector<8x2xf32> to vector<2xf32>
    %5 = vector.shape_cast %4 : vector<2xf32> to vector<1x2xf32>
    %c0_3 = arith.constant 0 : index
    %6 = memref.load %arg3[%c0_3] : memref<1xf32, #tpu.memory_space<smem>>
    %7 = vector.broadcast %6 : f32 to vector<1x2xf32>
    %8 = arith.addf %5, %7 : vector<1x2xf32>
    %cst_4 = arith.constant 0.000000e+00 : f32
    %9 = vector.broadcast %cst_4 : f32 to vector<1x2xf32>
    %10 = arith.subf %9, %8 : vector<1x2xf32>
    %11 = math.exp %10 : vector<1x2xf32>
    %cst_5 = arith.constant 1.000000e+00 : f32
    %12 = vector.broadcast %cst_5 : f32 to vector<1x2xf32>
    %13 = arith.addf %12, %11 : vector<1x2xf32>
    %cst_6 = arith.constant 1.000000e+00 : f32
    %14 = vector.broadcast %cst_6 : f32 to vector<1x2xf32>
    %15 = arith.divf %14, %13 : vector<1x2xf32>
    %c0_7 = arith.constant 0 : index
    %c0_8 = arith.constant 0 : index
    %16 = vector.load %arg4[%c0_7, %c0_8] : memref<1x2xf32, #tpu.memory_space<vmem>>, vector<1x2xf32>
    tpu.vector_store %arg4[%c0_7, %c0_8], %15 {strides = array<i32>} : memref<1x2xf32, #tpu.memory_space<vmem>>, vector<1x2xf32>,
    return
  }
  func.func @transform_0(%arg0: i32) -> (i32, i32) {
    %c0_i32 = arith.constant 0 : i32
    %c0_i32_0 = arith.constant 0 : i32
    return %c0_i32, %arg0 : i32, i32
  }
  func.func @transform_1(%arg0: i32) -> (i32, i32) {
    %c0_i32 = arith.constant 0 : i32
    %c0_i32_0 = arith.constant 0 : i32
    %c0_i32_1 = arith.constant 0 : i32
    return %c0_i32, %c0_i32_0 : i32, i32
  }
  func.func @transform_2(%arg0: i32) -> i32 {
    %c0_i32 = arith.constant 0 : i32
    %c0_i32_0 = arith.constant 0 : i32
    return %c0_i32 : i32
  }
  func.func @transform_3(%arg0: i32) -> (i32, i32) {
    %c0_i32 = arith.constant 0 : i32
    %c0_i32_0 = arith.constant 0 : i32
    return %c0_i32, %arg0 : i32, i32
  }
}

</mosaic_0001>

<llo_original>
// kernel: tpu_custom_call.1
$region0: #{tpu_custom_call.1}
  #allocation0 [shape = 'u32[]', space=smem, size = 0x4, offset = 0x4, fixed_abs, tag = 'smem constant byte address 0x4 - core index']
  #allocation1 [shape = 'u32[72,128]{1,0:T(1,128)}', space=vmem, size = 0x9000, scoped, tag = 'internal scratch']
  #allocation2 [shape = 'f32[1]{0:T(128)S(6)}', space=smem, size = 0x200, scoped, tag = 'scoped memory for tpu_custom_call.1']
  %s0 = inlined_call_operand.vmem [shape: f32[8,2], index: 0, kind: input, shape index: {}]
  %s1 = inlined_call_operand.vmem [shape: f32[8,1], index: 1, kind: input, shape index: {}]
  %s2 = inlined_call_operand.<no memory space> [shape: f32[1], index: 2, kind: input, shape index: {}]
  %s3 = inlined_call_operand.hbm [shape: f32[1,2], index: 3, kind: output, shape index: {}]
  %s4 = sld [smem:[#allocation0]]
  $region22: #{tpu_custom_call.1} parent=0
    _
  %s6 = ssub.s32 1, %s4
  %s7 = scalar_select 0, %s6, %s4
  %8 = sst [smem:[#allocation2]] %s2
  $region1: #{tpu_custom_call.1} parent=0
    #allocation3 [shape = 'u8[512]{0}', space=vmem, size = 0x400, scoped, tag = 'output window, operand 0, single buffered']
    #allocation4 [shape = 's32[1]{0}', space=sflag, size = 0x4, scoped, tag = 'scoped memory for tpu_custom_call.1']
    %9 = vsyncpa [#allocation4], 0
    // Predicated region
    $region2: #{tpu_custom_call.1} parent=1 // pred_check
      _
    $region3: #{tpu_custom_call.1} parent=1 // pred_check_branch
      %11 = sbr.rel (0) target = $region5
    $region4: #{tpu_custom_call.1} parent=1 // pred_region
      _
    $region5: #{tpu_custom_call.1} parent=1 // pred_fallthru
      _
    // Predicated region
    $region6: #{tpu_custom_call.1} parent=1 // pred_check
      _
    $region7: #{tpu_custom_call.1} parent=1 // pred_check_branch
      %13 = sbr.rel (0) target = $region9
    $region8: #{tpu_custom_call.1} parent=1 // pred_region
      _
    $region9: #{tpu_custom_call.1} parent=1 // pred_fallthru
      _
    // Predicated region
    $region10: #{tpu_custom_call.1} parent=1 // pred_check
      _
    $region11: #{tpu_custom_call.1} parent=1 // pred_check_branch
      %15 = sbr.rel (0) target = $region13
    $region12: #{tpu_custom_call.1} parent=1 // pred_region
      _
    $region13: #{tpu_custom_call.1} parent=1 // pred_fallthru
      _
    %v16 = vld [vmem:[%s0] sm:$0xff]
    %v17 = vld [vmem:[%s1] sm:$0xff]
    %19 = vset.pattern.permute.xlu0 0
    %20 = vperm.xlu0 %19, %v17
    %v21 = vpop.permute.xlu0 %20
    %v23 = vmul.f32 %v16, %v21
    %vm24 = vcmask 15360
    %v25 = vsel %vm24, %v23, 0.0
    %v26 = vrot.slane %v25, 4
    %v27 = vadd.f32 %v25, %v26
    %v28 = vrot.slane %v27, 2
    %v29 = vadd.f32 %v27, %v28
    %v30 = vrot.slane %v29, 1
    %v31 = vadd.f32 %v29, %v30
    %s32 = sld [smem:[#allocation2]]
    %v33 = vstv %s32
    %v34 = vadd.f32 %v31, %v33
    %v35 = vsub.f32 0.0, %v34
    %v36 = vmul.f32 %v35, 1.442695
    %v37 = vpow.pop %v36
    %v38 = vadd.f32 %v37, 1.0
    %v39 = vrcp.pop %v38
    %v40 = vmul.f32 %v38, %v39
    %v41 = vsub.f32 1.0, %v40
    %v42 = vmul.f32 %v39, %v41
    %v43 = vadd.f32 %v39, %v42
    %vm44 = vweird.f32 %v38
    %vm45 = vweird.f32 %v39
    %vm46 = vmor %vm44, %vm45
    %v47 = vsel %vm46, %v39, %v43
    %v48 = vand.u32 2147483647, %v38
    %vm49 = vcmp.eq.f32.partialorder %v48, 8.507059e+37
    %v50 = vand.u32 %v38, 2147483648
    %v51 = vor.u32 1.1754944e-38, %v50
    %v52 = vsel %vm49, %v51, %v47
    %v53 = vmul.f32 1.0, %v52
    %vm54 = vcmask 8192
    %55 = vst.msk [vmem:[#allocation3] sm:$0x1] %vm54, %v53
    // Predicated region
    $region14: #{tpu_custom_call.1} parent=1 // pred_check
      _
    $region15: #{tpu_custom_call.1} parent=1 // pred_check_branch
      %57 = sbr.rel (0) target = $region17
    $region16: #{tpu_custom_call.1} parent=1 // pred_region
      %59 = vsyncadd [#allocation4], 0
      %s61 = sshll.u32 [#allocation3], 4
      %s62 = int_to_ptr.vmem [resolvable:$true] %s61
      %s63 = sshll.u32 %s3, 4
      %s64 = int_to_ptr.hbm [resolvable:$true] %s63
      %66 = dma.vmem_to_hbm [thread:$0]  %s62, 16, %s64, [#allocation4]
    $region17: #{tpu_custom_call.1} parent=1 // pred_fallthru
      _
    // Predicated region
    $region18: #{tpu_custom_call.1} parent=1 // pred_check
      _
    $region19: #{tpu_custom_call.1} parent=1 // pred_check_branch
      %68 = sbr.rel (0) target = $region21
    $region20: #{tpu_custom_call.1} parent=1 // pred_region
      %70 = dma.done [#allocation4], 16
    $region21: #{tpu_custom_call.1} parent=1 // pred_fallthru
      _
    %71 = vsyncpa [#allocation4], 1

</llo_original>
